<compile_context>
chip_gen: v7x
topology: tpu7x:2x2x1
jax: 0.10.0
libtpu: 0.0.40
codegen_flags: <defaults>
</compile_context>

<pallas_src>
import math
import jax
import jax.numpy as jnp
from jax.experimental import pallas as pl
from jax.experimental.pallas import tpu as pltpu


def _round_up(x, m):
    return ((x + m - 1) // m) * m


def _pick_tile(dim, unit, target):
    """Largest multiple of `unit` that divides `dim` and is <= max(target, unit)."""
    best = unit
    t = unit
    limit = min(max(target, unit), dim)
    while t <= limit:
        if dim % t == 0:
            best = t
        t += unit
    return best


def _matmul_bias_kernel(x_ref, w_ref, b_ref, o_ref):
    # x_ref: (tm, tk) f32, w_ref: (tk, tn) f32, b_ref: (1, tn) f32.
    # o_ref: (tm, tn) f32; its block index ignores the K grid axis, so it stays
    # VMEM-resident across K and doubles as the accumulator (no scratch).
    k = pl.program_id(2)

    @pl.when(k == 0)
    def _init():
        # Bias is folded into the initialization (no epilogue pass needed).
        o_ref[...] = jnp.broadcast_to(b_ref[...], o_ref.shape)

    o_ref[...] += jnp.dot(x_ref[...], w_ref[...],
                          preferred_element_type=jnp.float32)


def prepare_nonnegative_linear(weight, bias, nonnegative_bool, monotonic_bool):
    """One-time (per-parameter) preparation -- keep OUT of the per-call path.

    Folds the +/-exp column transform into the weight (one fused elementwise
    pass), pre-transposes to (K, N) so N is the lane-dense axis, and zero-pads
    weight/bias to 128-multiples only (exact for the matmul).
    """
    N, K = weight.shape
    assert len(nonnegative_bool) == K and len(monotonic_bool) == K
    weight = weight.astype(jnp.float32)

    # weight[:, i] = +exp(w) / -exp(w) when monotonic[i] and nonnegative[i] is
    # not None; sign follows the reference's truthiness of nonnegative[i].
    transform = jnp.asarray(
        [bool(m) and (nn is not None)
         for nn, m in zip(nonnegative_bool, monotonic_bool)], dtype=bool)
    sign = jnp.asarray(
        [1.0 if nn else -1.0 for nn in nonnegative_bool], dtype=jnp.float32)
    w_eff = jnp.where(transform[None, :], sign[None, :] * jnp.exp(weight), weight)

    Kp, Np = _round_up(K, 128), _round_up(N, 128)
    w_prepared = jnp.pad(w_eff.T, ((0, Kp - K), (0, Np - N)))      # (Kp, Np)

    b = (jnp.zeros((N,), jnp.float32) if bias is None
         else bias.astype(jnp.float32))
    b_prepared = jnp.pad(b, (0, Np - N)).reshape(1, Np)            # (1, Np)
    # TODO(synk): optionally store w_prepared as bf16 (f32 accumulation keeps
    # the MXU path exact enough for inference) to halve weight DMA bytes.
    return w_prepared, b_prepared, N, K


def nonnegative_linear_forward(x, w_prepared, b_prepared, out_features,
                               in_features, *, tm_target=256, tn_target=256,
                               tk_target=512):
    """Per-call forward: pad x, pick tiles that divide the padded dims, run
    the tiled matmul+bias kernel, and slice back to (B, out_features)."""
    B, K = x.shape
    assert K == in_features
    Kp, Np = w_prepared.shape
    x = x.astype(jnp.float32)

    Mp = _round_up(B, 8)
    xp = jnp.pad(x, ((0, Mp - B), (0, Kp - K)))   # zero K-tail: exact matmul

    tm = _pick_tile(Mp, 8, tm_target)
    tk = _pick_tile(Kp, 128, tk_target)
    # Single M block (tiny batch): cap tn so the parallel N axis has >=2
    # blocks and both v7x TensorCores get work.
    eff_tn_target = tn_target
    if Mp == tm and Np >= 256:
        eff_tn_target = min(tn_target, Np // 2)
    tn = _pick_tile(Np, 128, eff_tn_target)

    grid = (Mp // tm, Np // tn, Kp // tk)

    cost = pl.CostEstimate(
        flops=2 * Mp * Np * Kp,
        transcendentals=0,  # exp folded into the weight at prepare time
        bytes_accessed=4 * (Mp * Kp + Kp * Np + Np + Mp * Np))

    # Double-buffered f32 tiles (x, w, b) + resident output block.
    vmem_need = 4 * (2 * (tm * tk + tk * tn + tn) + tm * tn)
    vmem_limit = None if vmem_need <= (24 << 20) else int(vmem_need + (8 << 20))

    out = pl.pallas_call(
        _matmul_bias_kernel,
        out_shape=jax.ShapeDtypeStruct((Mp, Np), jnp.float32),
        grid_spec=pltpu.PrefetchScalarGridSpec(
            num_scalar_prefetch=0,
            grid=grid,
            in_specs=[
                pl.BlockSpec((tm, tk), lambda i, j, k: (i, k)),   # x tile
                pl.BlockSpec((tk, tn), lambda i, j, k: (k, j)),   # weight tile
                pl.BlockSpec((1, tn), lambda i, j, k: (0, j)),    # bias tile
            ],
            out_specs=pl.BlockSpec((tm, tn), lambda i, j, k: (i, j)),
        ),
        compiler_params=pltpu.CompilerParams(
            dimension_semantics=("parallel", "parallel", "arbitrary"),
            vmem_limit_bytes=vmem_limit),
        cost_estimate=cost,
    )(xp, w_prepared, b_prepared)

    return out[:B, :out_features]


def make_nonnegative_linear(weight, bias, nonnegative_bool, monotonic_bool):
    """Builds a jitted forward with the weight prepared exactly once."""
    w_p, b_p, N, K = prepare_nonnegative_linear(
        weight, bias, nonnegative_bool, monotonic_bool)
    w_p = jax.block_until_ready(w_p)
    b_p = jax.block_until_ready(b_p)

    @jax.jit
    def forward(x):
        return nonnegative_linear_forward(x, w_p, b_p, N, K)

    return forward


def _reference(x, weight, bias, nonnegative_bool, monotonic_bool):
    """Pure-JAX reference mirroring the PyTorch forward (truthiness semantics)."""
    cols = []
    for i, (nn_flag, m_flag) in enumerate(zip(nonnegative_bool, monotonic_bool)):
        col = weight[:, i]
        if m_flag and (nn_flag is not None):
            col = jnp.exp(col) if nn_flag else -jnp.exp(col)
        cols.append(col)
    w_eff = jnp.stack(cols, axis=1)
    out = x @ w_eff.T
    if bias is not None:
        out = out + bias
    return out


def _run_case(key, batch, in_features, out_features, nonnegative_bool,
              monotonic_bool, use_bias=True):
    kw, kb, kx = jax.random.split(key, 3)
    bound = 1.0 / math.sqrt(in_features)
    weight = jax.random.uniform(
        kw, (out_features, in_features), minval=-bound, maxval=bound,
        dtype=jnp.float32)
    bias = (jax.random.uniform(kb, (out_features,), minval=-bound,
                               maxval=bound, dtype=jnp.float32)
            if use_bias else None)
    x = jax.random.normal(kx, (batch, in_features), dtype=jnp.float32)

    forward = make_nonnegative_linear(weight, bias, nonnegative_bool,
                                      monotonic_bool)
    out = jax.block_until_ready(forward(x))

    ref = _reference(x, weight, bias, nonnegative_bool, monotonic_bool)
    assert out.shape == (batch, out_features)
    err = jnp.max(jnp.abs(out - ref))
    assert jnp.allclose(out, ref, atol=1e-4, rtol=1e-4), f"max abs err {err}"


if __name__ == "__main__":
    key = jax.random.PRNGKey(0)
    k1, k2 = jax.random.split(key)

    # Small case matching the module's toy sizes (mix of True / False / None).
    nonneg_small = [True, False, None, True, False, None, True, False]
    mono_small = [True, True, True, False, False, True, True, False]
    _run_case(k1, batch=2, in_features=8, out_features=32,
              nonnegative_bool=nonneg_small, monotonic_bool=mono_small)

    # Larger case: non-128-multiple N/K (padding policy), multi-block N grid.
    K2, N2 = 384, 320
    nonneg_big = [(True, False, None)[i % 3] for i in range(K2)]
    mono_big = [(i % 2 == 0) for i in range(K2)]
    _run_case(k2, batch=16, in_features=K2, out_features=N2,
              nonnegative_bool=nonneg_big, monotonic_bool=mono_big)

    print("KERNEL_OK")
</pallas_src>

<mosaic_0001>
module attributes {stable_mosaic.version = 11 : i64} {
  func.func @_matmul_bias_kernel(%arg0: i32, %arg1: i32, %arg2: i32, %arg3: memref<8x128xf32, #tpu.memory_space<vmem>>, %arg4: memref<128x128xf32, #tpu.memory_space<vmem>>, %arg5: memref<1x128xf32, #tpu.memory_space<vmem>>, %arg6: memref<8x128xf32, #tpu.memory_space<vmem>>) attributes {dimension_semantics = [#tpu.dimension_semantics<parallel>, #tpu.dimension_semantics<parallel>, #tpu.dimension_semantics<arbitrary>], iteration_bounds = array<i64: 1, 1, 1>, scalar_prefetch = 0 : i64, scratch_operands = 0 : i64, tpu.core_type = #tpu.core_type<tc>, window_params = [{transform_indices = @transform_0, window_bounds = array<i64: 8, 128>}, {transform_indices = @transform_1, window_bounds = array<i64: 128, 128>}, {transform_indices = @transform_2, window_bounds = array<i64: 1, 128>}, {transform_indices = @transform_3, window_bounds = array<i64: 8, 128>}]} {
    %c0_i32 = arith.constant 0 : i32
    %0 = arith.cmpi eq, %arg2, %c0_i32 : i32
    %1 = arith.extui %0 : i1 to i32
    %c0_i32_0 = arith.constant 0 : i32
    %2 = arith.cmpi ne, %1, %c0_i32_0 : i32
    scf.if %2 {
      %c0_8 = arith.constant 0 : index
      %c0_9 = arith.constant 0 : index
      %9 = vector.load %arg5[%c0_8, %c0_9] : memref<1x128xf32, #tpu.memory_space<vmem>>, vector<1x128xf32>
      %10 = vector.shape_cast %9 : vector<1x128xf32> to vector<1x128xf32>
      %11 = vector.broadcast %10 : vector<1x128xf32> to vector<8x128xf32>
      %c0_10 = arith.constant 0 : index
      %c0_11 = arith.constant 0 : index
      %12 = vector.load %arg6[%c0_10, %c0_11] : memref<8x128xf32, #tpu.memory_space<vmem>>, vector<8x128xf32>
      tpu.vector_store %arg6[%c0_10, %c0_11], %11 {strides = array<i32>} : memref<8x128xf32, #tpu.memory_space<vmem>>, vector<8x128xf32>,
    } else {
    }
    %c0 = arith.constant 0 : index
    %c0_1 = arith.constant 0 : index
    %3 = vector.load %arg6[%c0, %c0_1] : memref<8x128xf32, #tpu.memory_space<vmem>>, vector<8x128xf32>
    %c0_2 = arith.constant 0 : index
    %c0_3 = arith.constant 0 : index
    %4 = vector.load %arg3[%c0_2, %c0_3] : memref<8x128xf32, #tpu.memory_space<vmem>>, vector<8x128xf32>
    %c0_4 = arith.constant 0 : index
    %c0_5 = arith.constant 0 : index
    %5 = vector.load %arg4[%c0_4, %c0_5] : memref<128x128xf32, #tpu.memory_space<vmem>>, vector<128x128xf32>
    %cst = arith.constant dense<0.000000e+00> : vector<8x128xf32>
    %6 = tpu.matmul %4, %5, %cst {dimension_numbers = #tpu.dot_dimension_numbers<[1], [0], [0], [1], [0, 0, 1, 1], [], []>} : vector<8x128xf32>, vector<128x128xf32>, vector<8x128xf32> -> vector<8x128xf32>
    %7 = arith.addf %3, %6 : vector<8x128xf32>
    %c0_6 = arith.constant 0 : index
    %c0_7 = arith.constant 0 : index
    %8 = vector.load %arg6[%c0_6, %c0_7] : memref<8x128xf32, #tpu.memory_space<vmem>>, vector<8x128xf32>
    tpu.vector_store %arg6[%c0_6, %c0_7], %7 {strides = array<i32>} : memref<8x128xf32, #tpu.memory_space<vmem>>, vector<8x128xf32>,
    return
  }
  func.func @transform_0(%arg0: i32, %arg1: i32, %arg2: i32) -> (i32, i32) {
    %c0_i32 = arith.constant 0 : i32
    return %arg0, %arg2 : i32, i32
  }
  func.func @transform_1(%arg0: i32, %arg1: i32, %arg2: i32) -> (i32, i32) {
    %c0_i32 = arith.constant 0 : i32
    return %arg2, %arg1 : i32, i32
  }
  func.func @transform_2(%arg0: i32, %arg1: i32, %arg2: i32) -> (i32, i32) {
    %c0_i32 = arith.constant 0 : i32
    %c0_i32_0 = arith.constant 0 : i32
    return %c0_i32, %arg1 : i32, i32
  }
  func.func @transform_3(%arg0: i32, %arg1: i32, %arg2: i32) -> (i32, i32) {
    %c0_i32 = arith.constant 0 : i32
    return %arg0, %arg1 : i32, i32
  }
}

</mosaic_0001>

<llo_original>
// kernel: forward.1
$region0: #{forward.1}
  #allocation0 [shape = 'u32[]', space=smem, size = 0x4, offset = 0x4, fixed_abs, tag = 'smem constant byte address 0x4 - core index']
  #allocation1 [shape = 'u32[144,128]{1,0:T(1,128)}', space=vmem, size = 0x12000, scoped, tag = 'internal scratch']
  %s0 = inlined_call_operand.vmem [shape: f32[8,128], index: 0, kind: input, shape index: {}]
  %s1 = inlined_call_operand.hbm [shape: f32[128,128], index: 1, kind: input, shape index: {}]
  %s2 = inlined_call_operand.vmem [shape: f32[1,128], index: 2, kind: input, shape index: {}]
  %s3 = inlined_call_operand.vmem [shape: f32[8,128], index: 3, kind: output, shape index: {}]
  %s4 = sld [smem:[#allocation0]]
  $region30: #{forward.1} parent=0
    _
  %s6 = ssub.s32 1, %s4
  %s7 = scalar_select 0, %s6, %s4
  $region1: #{forward.1} parent=0
    #allocation2 [shape = 'u8[65536]{0}', space=vmem, size = 0x10000, scoped, tag = 'input window, operand 1, single buffered']
    #allocation3 [shape = 's32[1]{0}', space=sflag, size = 0x4, scoped, tag = 'scoped memory for forward.1']
    %8 = vsyncpa [#allocation3], 0
    // Predicated region
    $region2: #{forward.1} parent=1 // pred_check
      _
    $region3: #{forward.1} parent=1 // pred_check_branch
      %10 = sbr.rel (0) target = $region5
    $region4: #{forward.1} parent=1 // pred_region
      _
    $region5: #{forward.1} parent=1 // pred_fallthru
      _
    // Predicated region
    $region6: #{forward.1} parent=1 // pred_check
      _
    $region7: #{forward.1} parent=1 // pred_check_branch
      %12 = sbr.rel (0) target = $region9
    $region8: #{forward.1} parent=1 // pred_region
      %s14 = ssub.s32 2048, 2048
      %15 = vsyncadd [#allocation3], %s14
      %s16 = sshll.u32 [#allocation2], 4
      %s17 = int_to_ptr.vmem [resolvable:$true] %s16
      %22 = dma.hbm_to_vmem [thread:$0]  %s1, 2048, %s17, [#allocation3], 128, 128, 8
    $region9: #{forward.1} parent=1 // pred_fallthru
      _
    // Predicated region
    $region10: #{forward.1} parent=1 // pred_check
      _
    $region11: #{forward.1} parent=1 // pred_check_branch
      %24 = sbr.rel (0) target = $region13
    $region12: #{forward.1} parent=1 // pred_region
      _
    $region13: #{forward.1} parent=1 // pred_fallthru
      _
    // Predicated region
    $region14: #{forward.1} parent=1 // pred_check
      _
    $region15: #{forward.1} parent=1 // pred_check_branch
      %26 = sbr.rel (0) target = $region17
    $region16: #{forward.1} parent=1 // pred_region
      %27 = dma.done [#allocation3], 2048
    $region17: #{forward.1} parent=1 // pred_fallthru
      _
    %p28 = scmp.eq.s32.totalorder 0, 0
    // Predicated region
    $region18: #{forward.1} parent=1 // pred_check
      %p29 = pneg %p28
    $region19: #{forward.1} parent=1 // pred_check_branch
      %31 = sbr.rel (%p29) target = $region21
    $region20: #{forward.1} parent=1 // pred_region
      %v32 = vld [vmem:[%s2] sm:$0x1]
      %v34 = vlaneseq
      %v35 = vshrl.u32 %v34, 7
      %v36 = vsub.s32 0, %v35
      %v37 = vrot.slane %v32, %v36
      %39 = vst [vmem:[%s3] sm:$0xff] %v37
    $region21: #{forward.1} parent=1 // pred_fallthru
      _
    %v40 = vld [vmem:[%s3] sm:$0xff]
    %v41 = vld [vmem:[%s0] sm:$0xff]
    %v42 = vld [vmem:[#allocation2] sm:$0xff]
    %v43 = vld [vmem:[#allocation2 + $0x8] sm:$0xff]
    %v44 = vld [vmem:[#allocation2 + $0x10] sm:$0xff]
    %v45 = vld [vmem:[#allocation2 + $0x18] sm:$0xff]
    %v46 = vld [vmem:[#allocation2 + $0x20] sm:$0xff]
    %v47 = vld [vmem:[#allocation2 + $0x28] sm:$0xff]
    %v48 = vld [vmem:[#allocation2 + $0x30] sm:$0xff]
    %v49 = vld [vmem:[#allocation2 + $0x38] sm:$0xff]
    %v50 = vld [vmem:[#allocation2 + $0x40] sm:$0xff]
    %v51 = vld [vmem:[#allocation2 + $0x48] sm:$0xff]
    %v52 = vld [vmem:[#allocation2 + $0x50] sm:$0xff]
    %v53 = vld [vmem:[#allocation2 + $0x58] sm:$0xff]
    %v54 = vld [vmem:[#allocation2 + $0x60] sm:$0xff]
    %v55 = vld [vmem:[#allocation2 + $0x68] sm:$0xff]
    %v56 = vld [vmem:[#allocation2 + $0x70] sm:$0xff]
    %v57 = vld [vmem:[#allocation2 + $0x78] sm:$0xff]
    %58 = vmatprep.subr.mxu0 0.0
    %59 = vmatpush1.msra.mxu0 %v42
    %60 = vmatprep.subr.mxu0 0.0
    %61 = vmatpush1.msra.mxu0 %v43
    %62 = vmatprep.subr.mxu0 0.0
    %63 = vmatpush1.msra.mxu0 %v44
    %64 = vmatprep.subr.mxu0 0.0
    %65 = vmatpush1.msra.mxu0 %v45
    %66 = vmatprep.subr.mxu0 0.0
    %67 = vmatpush1.msra.mxu0 %v46
    %68 = vmatprep.subr.mxu0 0.0
    %69 = vmatpush1.msra.mxu0 %v47
    %70 = vmatprep.subr.mxu0 0.0
    %71 = vmatpush1.msra.mxu0 %v48
    %72 = vmatprep.subr.mxu0 0.0
    %73 = vmatpush1.msra.mxu0 %v49
    %74 = vmatprep.subr.mxu0 0.0
    %75 = vmatpush1.msra.mxu0 %v50
    %76 = vmatprep.subr.mxu0 0.0
    %77 = vmatpush1.msra.mxu0 %v51
    %78 = vmatprep.subr.mxu0 0.0
    %79 = vmatpush1.msra.mxu0 %v52
    %80 = vmatprep.subr.mxu0 0.0
    %81 = vmatpush1.msra.mxu0 %v53
    %82 = vmatprep.subr.mxu0 0.0
    %83 = vmatpush1.msra.mxu0 %v54
    %84 = vmatprep.subr.mxu0 0.0
    %85 = vmatpush1.msra.mxu0 %v55
    %86 = vmatprep.subr.mxu0 0.0
    %87 = vmatpush1.msra.mxu0 %v56
    %88 = vmatprep.subr.mxu0 0.0
    %89 = vmatpush1.msra.mxu0 %v57
    %90 = vmatprep.subr.mxu0 0.0
    %91 = vmatpush1.msra.mxu0 0.0
    %92 = vmatprep.subr.mxu0 0.0
    %93 = vmatpush1.msra.mxu0 0.0
    %94 = vmatprep.subr.mxu0 0.0
    %95 = vmatpush1.msra.mxu0 0.0
    %96 = vmatprep.subr.mxu0 0.0
    %97 = vmatpush1.msra.mxu0 0.0
    %98 = vmatprep.subr.mxu0 0.0
    %99 = vmatpush1.msra.mxu0 0.0
    %100 = vmatprep.subr.mxu0 0.0
    %101 = vmatpush1.msra.mxu0 0.0
    %102 = vmatprep.subr.mxu0 0.0
    %103 = vmatpush1.msra.mxu0 0.0
    %104 = vmatprep.subr.mxu0 0.0
    %105 = vmatpush1.msra.mxu0 0.0
    %106 = vmatprep.subr.mxu0 0.0
    %107 = vmatpush1.msra.mxu0 0.0
    %108 = vmatprep.subr.mxu0 0.0
    %109 = vmatpush1.msra.mxu0 0.0
    %110 = vmatprep.subr.mxu0 0.0
    %111 = vmatpush1.msra.mxu0 0.0
    %112 = vmatprep.subr.mxu0 0.0
    %113 = vmatpush1.msra.mxu0 0.0
    %114 = vmatprep.subr.mxu0 0.0
    %115 = vmatpush1.msra.mxu0 0.0
    %116 = vmatprep.subr.mxu0 0.0
    %117 = vmatpush1.msra.mxu0 0.0
    %118 = vmatprep.subr.mxu0 0.0
    %119 = vmatpush1.msra.mxu0 0.0
    %120 = vmatprep.subr.mxu0 0.0
    %121 = vmatpush1.msra.mxu0 0.0
    %122 = vmatprep.mubr.f32.mxu0 0.0
    %123 = vmatmul.mubr.f32.gmra.mrb[0].mxu0 %v41
    %v124 = vpop.f32.mrb[0].mxu0
    %v125 = vadd.f32 0.0, %v124
    %v126 = vpop.f32.mrb[0].mxu0
    %127 = vdwg.mxu0
    %v128 = vadd.f32 %v40, %v125
    %129 = vst [vmem:[%s3] sm:$0xff] %v128
    // Predicated region
    $region22: #{forward.1} parent=1 // pred_check
      _
    $region23: #{forward.1} parent=1 // pred_check_branch
      %131 = sbr.rel (0) target = $region25
    $region24: #{forward.1} parent=1 // pred_region
      _
    $region25: #{forward.1} parent=1 // pred_fallthru
      _
    // Predicated region
    $region26: #{forward.1} parent=1 // pred_check
      _
    $region27: #{forward.1} parent=1 // pred_check_branch
      %133 = sbr.rel (0) target = $region29
    $region28: #{forward.1} parent=1 // pred_region
      _
    $region29: #{forward.1} parent=1 // pred_fallthru
      _
    %134 = vsyncpa [#allocation3], 1

</llo_original>
